<compile_context>
chip_gen: v7x
topology: tpu7x:2x2x1
jax: 0.10.0
libtpu: 0.0.40
codegen_flags: <defaults>
</compile_context>

<pallas_src>
import functools
import math

import jax
import jax.numpy as jnp
from jax import lax
from jax.experimental import pallas as pl
from jax.experimental.pallas import tpu as pltpu


def _gelu(x, approximate):
    if approximate:
        # tanh approximation -> EUP slot; deviates slightly from PyTorch's
        # default exact GELU, so it is opt-in.
        return jax.nn.gelu(x, approximate=True)
    # PyTorch nn.GELU default: 0.5*x*(1+erf(x/sqrt(2))).
    return 0.5 * x * (1.0 + lax.erf(x * (1.0 / math.sqrt(2.0))))


def _round_up(n, m):
    return ((n + m - 1) // m) * m


def _vmem_capacity():
    """Physical VMEM bytes per core, and whether detection succeeded."""
    try:
        info = pltpu.get_tpu_info()
        cap = getattr(info, "vmem_capacity_bytes", None)
        if cap:
            return int(cap), True
    except Exception:
        pass
    return 64 * 1024 * 1024, False        # conservative (v7x per-TC) fallback


def _vmem_estimate(tile, th, Dp, cbytes):
    """Conservative resident-VMEM estimate for one grid step (all operands
    assumed double-buffered; x assumed f32)."""
    x_tile = 2 * tile * Dp * 4                       # input rows
    o_tile = 2 * tile * Dp * 4                       # f32 output/accumulator
    weights = 2 * (2 * Dp * th + th * Dp) * cbytes   # fused W1 block + W2 block
    biases = 2 * (2 * th) * 4 + 2 * Dp * 4
    interm = tile * th * 4 * 8                       # hfull + gelu/GLU temps
    return x_tile + o_tile + weights + biases + interm


def glu_mlp_kernel(x_ref, w1f_ref, b1f_ref, w2_ref, b2_ref, o_ref, *,
                   th, compute_dtype, approx_gelu):
    # x_ref  : (TN, Dp)   row tile of flattened input (f32 or compute dtype)
    # w1f_ref: (Dp, 2*th) ffn1 weight block, columns = [value th | gate th]
    # b1f_ref: (1, 2*th)  matching fused ffn1 bias block (f32)
    # w2_ref : (th, Dp)   ffn2 weight rows for this h block
    # b2_ref : (1, Dp)    ffn2 bias (f32)
    # o_ref  : (TN, Dp)   f32 output tile, accumulated over the h grid axis
    h = pl.program_id(1)

    @pl.when(h == 0)
    def _init():
        # Start the accumulator at the ffn2 bias (added exactly once per row).
        o_ref[...] = jnp.broadcast_to(b2_ref[...], o_ref.shape).astype(o_ref.dtype)

    x = x_ref[...].astype(compute_dtype)

    # One wide matmul over the fused [value | gate] column block fills the
    # 256-wide MXU on v6e/v7x; the split below is lane-aligned (th % 128 == 0).
    hfull = jnp.dot(x, w1f_ref[...], preferred_element_type=jnp.float32)
    hfull = hfull + b1f_ref[...]

    # Gate half first, then value half: one fewer (TN, th) f32 temp live.
    act = _gelu(hfull[:, th:], approx_gelu)
    z = (hfull[:, :th] * act).astype(compute_dtype)

    # TODO(synk): dropout (p=0.1) is identity in eval mode; training-mode RNG
    # dropout is not implemented here.

    o_ref[...] += jnp.dot(z, w2_ref[...], preferred_element_type=jnp.float32)


def glu_mlp(x, w1, b1, w2, b2, *, row_tile=1024, compute_dtype=jnp.bfloat16,
            approx_gelu=False):
    """GLUMlp forward.

    x : (B, T, D) float32
    w1: (D, 2H)   ffn1 weight, (in, out) layout (transposed vs PyTorch)
    b1: (2H,)
    w2: (H, D)    ffn2 weight, (in, out) layout (transposed vs PyTorch)
    b2: (D,)
    """
    B, T, D = x.shape
    H = w1.shape[1] // 2
    N = B * T

    cbytes = jnp.dtype(compute_dtype).itemsize
    floor = 16 if cbytes < 4 else 8          # full bf16 sublane tile
    Dp = _round_up(D, 128)
    Hp0 = _round_up(H, 128)

    cap, detected = _vmem_capacity()
    budget = int(cap * 0.70)                 # ~45 MiB on v7x, ~90 MiB on v5e/v6e

    # --- hidden-dim (GLU-half) block size: keep weight blocks (double-
    #     buffered) within half the budget, so row tiles stay large ---------
    th = Hp0
    while th > 128 and 2 * (3 * Dp * th) * cbytes > budget // 2:
        th = _round_up(th // 2, 128)
    Hp = _round_up(H, th)
    nh = Hp // th

    # --- row tile (shrink until the whole step fits the budget) ------------
    tile = max(floor, min(_round_up(row_tile, floor), _round_up(N, floor)))
    while tile > floor and _vmem_estimate(tile, th, Dp, cbytes) > budget:
        tile = max(floor, _round_up(tile // 2, floor))
    if _vmem_estimate(tile, th, Dp, cbytes) > budget:
        raise ValueError(
            f"GLUMlp does not fit VMEM even at minimum tiling "
            f"(rows={tile}, h_block={th}, Dp={Dp}, budget={budget} bytes).")

    # v7x (2 TensorCores, 64 MiB VMEM): keep >= 4 row blocks so each core has
    # >= 2 pipeline steps.  Skipped on single-TC chips (v5e/v6e).
    multi_tc = detected and cap <= 64 * 1024 * 1024
    if multi_tc:
        while (_round_up(N, tile) // tile) < 4 and tile > floor:
            tile = max(floor, _round_up(tile // 2, floor))

    rows = _round_up(N, tile)

    # --- input: avoid an extra HBM pass unless padding is required ----------
    x2 = x.reshape(N, D)
    if Dp != D or rows != N:
        # A copy is unavoidable; cast to the compute dtype at the same time so
        # the kernel reads half the bytes.
        x2 = jnp.pad(x2, ((0, rows - N), (0, Dp - D))).astype(compute_dtype)
    # else: pass f32 rows straight through; the kernel casts to compute_dtype.

    # --- weights: fused [value | gate] column blocks of width th ------------
    def pad2(m, r, c):
        return jnp.pad(m, ((0, r - m.shape[0]), (0, c - m.shape[1])))

    w1a = pad2(w1[:, :H], Dp, Hp)                       # value half, (in, out)
    w1g = pad2(w1[:, H:], Dp, Hp)                       # gate half
    w1f = jnp.stack([w1a.reshape(Dp, nh, th),
                     w1g.reshape(Dp, nh, th)], axis=2)  # (Dp, nh, 2, th)
    w1f = w1f.reshape(Dp, nh * 2 * th).astype(compute_dtype)

    b1a = jnp.pad(b1[:H], (0, Hp - H))
    b1g = jnp.pad(b1[H:], (0, Hp - H))
    b1f = jnp.stack([b1a.reshape(nh, th),
                     b1g.reshape(nh, th)], axis=1).reshape(1, nh * 2 * th)
    b1f = b1f.astype(jnp.float32)

    w2p = pad2(w2, Hp, Dp).astype(compute_dtype)
    b2p = jnp.pad(b2, (0, Dp - D)).reshape(1, Dp).astype(jnp.float32)

    est = _vmem_estimate(tile, th, Dp, cbytes)
    vmem_limit = int(min(cap, max(48 * 1024 * 1024, int(1.3 * est) + (8 << 20))))

    cost = pl.CostEstimate(
        flops=2 * rows * Dp * (2 * Hp) + 2 * rows * Hp * Dp,
        transcendentals=rows * Hp,
        bytes_accessed=(rows * Dp * jnp.dtype(x2.dtype).itemsize
                        + (Dp * 2 * Hp + Hp * Dp) * cbytes
                        + (2 * Hp + Dp) * 4
                        + rows * Dp * 4))

    kernel = functools.partial(glu_mlp_kernel, th=th,
                               compute_dtype=compute_dtype,
                               approx_gelu=approx_gelu)

    out = pl.pallas_call(
        kernel,
        out_shape=jax.ShapeDtypeStruct((rows, Dp), jnp.float32),
        grid_spec=pltpu.PrefetchScalarGridSpec(
            num_scalar_prefetch=0,
            grid=(rows // tile, nh),                       # reduction axis last
            in_specs=[
                pl.BlockSpec((tile, Dp), lambda i, h: (i, 0)),     # x rows
                pl.BlockSpec((Dp, 2 * th), lambda i, h: (0, h)),   # fused W1 blk
                pl.BlockSpec((1, 2 * th), lambda i, h: (0, h)),    # fused b1 blk
                pl.BlockSpec((th, Dp), lambda i, h: (h, 0)),       # W2 rows
                pl.BlockSpec((1, Dp), lambda i, h: (0, 0)),        # b2
            ],
            out_specs=pl.BlockSpec((tile, Dp), lambda i, h: (i, 0)),
        ),
        compiler_params=pltpu.CompilerParams(
            dimension_semantics=("parallel", "arbitrary"),
            vmem_limit_bytes=vmem_limit),
        cost_estimate=cost,
    )(x2, w1f, b1f, w2p, b2p)

    if rows != N or Dp != D:
        out = out[:N, :D]                     # drop padded rows/cols (garbage)
    return out.reshape(B, T, D).astype(x.dtype)


def reference_glu_mlp(x, w1, b1, w2, b2):
    h = jnp.einsum("btd,dh->bth", x, w1) + b1
    H = w2.shape[0]
    outputs, gate = h[..., :H], h[..., H:]
    z = outputs * _gelu(gate, approximate=False)
    return jnp.einsum("bth,hd->btd", z, w2) + b2


if __name__ == "__main__":
    # Small shapes consistent with the module: dim=32, expand=4 -> hidden 128,
    # GLU half = 64. Batch=2, seq=8.
    dim, expand = 32, 4
    B, T = 2, 8
    H2 = dim * expand          # 128
    H = H2 // 2                # 64

    key = jax.random.PRNGKey(0)
    kx, kw1, kb1, kw2, kb2 = jax.random.split(key, 5)

    # Deterministic init mimicking nn.Linear's uniform(-1/sqrt(fan_in), ...).
    bound1 = 1.0 / math.sqrt(dim)
    bound2 = 1.0 / math.sqrt(H)
    w1 = jax.random.uniform(kw1, (dim, H2), jnp.float32, -bound1, bound1)
    b1 = jax.random.uniform(kb1, (H2,), jnp.float32, -bound1, bound1)
    w2 = jax.random.uniform(kw2, (H, dim), jnp.float32, -bound2, bound2)
    b2 = jax.random.uniform(kb2, (dim,), jnp.float32, -bound2, bound2)

    x = jax.random.normal(kx, (B, T, dim), jnp.float32)

    y = glu_mlp(x, w1, b1, w2, b2)
    jax.block_until_ready(y)

    y_ref = reference_glu_mlp(x, w1, b1, w2, b2)
    assert y.shape == (B, T, dim)
    # bf16 matmul inputs with f32 accumulation -> tolerance loosened vs the
    # pure-f32 reference.
    assert jnp.allclose(y, y_ref, atol=3e-2, rtol=3e-2), "mismatch vs reference"

    print("KERNEL_OK")
</pallas_src>

<mosaic_0001>
module attributes {stable_mosaic.version = 11 : i64} {
  func.func @glu_mlp_kernel(%arg0: i32, %arg1: i32, %arg2: memref<16x128xbf16, #tpu.memory_space<vmem>>, %arg3: memref<128x256xbf16, #tpu.memory_space<vmem>>, %arg4: memref<1x256xf32, #tpu.memory_space<vmem>>, %arg5: memref<128x128xbf16, #tpu.memory_space<vmem>>, %arg6: memref<1x128xf32, #tpu.memory_space<vmem>>, %arg7: memref<16x128xf32, #tpu.memory_space<vmem>>) attributes {dimension_semantics = [#tpu.dimension_semantics<parallel>, #tpu.dimension_semantics<arbitrary>], iteration_bounds = array<i64: 1, 1>, scalar_prefetch = 0 : i64, scratch_operands = 0 : i64, tpu.core_type = #tpu.core_type<tc>, window_params = [{transform_indices = @transform_0, window_bounds = array<i64: 16, 128>}, {transform_indices = @transform_1, window_bounds = array<i64: 128, 256>}, {transform_indices = @transform_2, window_bounds = array<i64: 1, 256>}, {transform_indices = @transform_3, window_bounds = array<i64: 128, 128>}, {pipeline_mode = #tpu.pipeline_mode<synchronous>, transform_indices = @transform_4, window_bounds = array<i64: 1, 128>}, {transform_indices = @transform_5, window_bounds = array<i64: 16, 128>}]} {
    %c0_i32 = arith.constant 0 : i32
    %0 = arith.cmpi eq, %arg1, %c0_i32 : i32
    %1 = arith.extui %0 : i1 to i32
    %c0_i32_0 = arith.constant 0 : i32
    %2 = arith.cmpi ne, %1, %c0_i32_0 : i32
    scf.if %2 {
      %c0_16 = arith.constant 0 : index
      %c0_17 = arith.constant 0 : index
      %26 = vector.load %arg6[%c0_16, %c0_17] : memref<1x128xf32, #tpu.memory_space<vmem>>, vector<1x128xf32>
      %27 = vector.shape_cast %26 : vector<1x128xf32> to vector<1x128xf32>
      %28 = vector.broadcast %27 : vector<1x128xf32> to vector<16x128xf32>
      %c0_18 = arith.constant 0 : index
      %c0_19 = arith.constant 0 : index
      %29 = vector.load %arg7[%c0_18, %c0_19] : memref<16x128xf32, #tpu.memory_space<vmem>>, vector<16x128xf32>
      tpu.vector_store %arg7[%c0_18, %c0_19], %28 {strides = array<i32>} : memref<16x128xf32, #tpu.memory_space<vmem>>, vector<16x128xf32>,
    } else {
    }
    %c0 = arith.constant 0 : index
    %c0_1 = arith.constant 0 : index
    %3 = vector.load %arg2[%c0, %c0_1] : memref<16x128xbf16, #tpu.memory_space<vmem>>, vector<16x128xbf16>
    %c0_2 = arith.constant 0 : index
    %c0_3 = arith.constant 0 : index
    %4 = vector.load %arg3[%c0_2, %c0_3] : memref<128x256xbf16, #tpu.memory_space<vmem>>, vector<128x256xbf16>
    %cst = arith.constant dense<0.000000e+00> : vector<16x256xf32>
    %5 = tpu.matmul %3, %4, %cst {dimension_numbers = #tpu.dot_dimension_numbers<[1], [0], [0], [1], [0, 0, 1, 1], [], []>} : vector<16x128xbf16>, vector<128x256xbf16>, vector<16x256xf32> -> vector<16x256xf32>
    %c0_4 = arith.constant 0 : index
    %c0_5 = arith.constant 0 : index
    %6 = vector.load %arg4[%c0_4, %c0_5] : memref<1x256xf32, #tpu.memory_space<vmem>>, vector<1x256xf32>
    %7 = vector.broadcast %6 : vector<1x256xf32> to vector<16x256xf32>
    %8 = arith.addf %5, %7 : vector<16x256xf32>
    %9 = vector.extract_strided_slice %8 {offsets = [0, 128], sizes = [16, 128], strides = [1, 1]} : vector<16x256xf32> to vector<16x128xf32>
    %cst_6 = arith.constant 5.000000e-01 : f32
    %10 = vector.broadcast %cst_6 : f32 to vector<16x128xf32>
    %11 = arith.mulf %10, %9 : vector<16x128xf32>
    %cst_7 = arith.constant 0.707106769 : f32
    %12 = vector.broadcast %cst_7 : f32 to vector<16x128xf32>
    %13 = arith.mulf %9, %12 : vector<16x128xf32>
    %14 = math.erf %13 : vector<16x128xf32>
    %cst_8 = arith.constant 1.000000e+00 : f32
    %15 = vector.broadcast %cst_8 : f32 to vector<16x128xf32>
    %16 = arith.addf %15, %14 : vector<16x128xf32>
    %17 = arith.mulf %11, %16 : vector<16x128xf32>
    %18 = vector.extract_strided_slice %8 {offsets = [0, 0], sizes = [16, 128], strides = [1, 1]} : vector<16x256xf32> to vector<16x128xf32>
    %19 = arith.mulf %18, %17 : vector<16x128xf32>
    %20 = arith.truncf %19 : vector<16x128xf32> to vector<16x128xbf16>
    %c0_9 = arith.constant 0 : index
    %c0_10 = arith.constant 0 : index
    %21 = vector.load %arg7[%c0_9, %c0_10] : memref<16x128xf32, #tpu.memory_space<vmem>>, vector<16x128xf32>
    %c0_11 = arith.constant 0 : index
    %c0_12 = arith.constant 0 : index
    %22 = vector.load %arg5[%c0_11, %c0_12] : memref<128x128xbf16, #tpu.memory_space<vmem>>, vector<128x128xbf16>
    %cst_13 = arith.constant dense<0.000000e+00> : vector<16x128xf32>
    %23 = tpu.matmul %20, %22, %cst_13 {dimension_numbers = #tpu.dot_dimension_numbers<[1], [0], [0], [1], [0, 0, 1, 1], [], []>} : vector<16x128xbf16>, vector<128x128xbf16>, vector<16x128xf32> -> vector<16x128xf32>
    %24 = arith.addf %21, %23 : vector<16x128xf32>
    %c0_14 = arith.constant 0 : index
    %c0_15 = arith.constant 0 : index
    %25 = vector.load %arg7[%c0_14, %c0_15] : memref<16x128xf32, #tpu.memory_space<vmem>>, vector<16x128xf32>
    tpu.vector_store %arg7[%c0_14, %c0_15], %24 {strides = array<i32>} : memref<16x128xf32, #tpu.memory_space<vmem>>, vector<16x128xf32>,
    return
  }
  func.func @transform_0(%arg0: i32, %arg1: i32) -> (i32, i32) {
    %c0_i32 = arith.constant 0 : i32
    %c0_i32_0 = arith.constant 0 : i32
    return %arg0, %c0_i32 : i32, i32
  }
  func.func @transform_1(%arg0: i32, %arg1: i32) -> (i32, i32) {
    %c0_i32 = arith.constant 0 : i32
    %c0_i32_0 = arith.constant 0 : i32
    return %c0_i32, %arg1 : i32, i32
  }
  func.func @transform_2(%arg0: i32, %arg1: i32) -> (i32, i32) {
    %c0_i32 = arith.constant 0 : i32
    %c0_i32_0 = arith.constant 0 : i32
    return %c0_i32, %arg1 : i32, i32
  }
  func.func @transform_3(%arg0: i32, %arg1: i32) -> (i32, i32) {
    %c0_i32 = arith.constant 0 : i32
    %c0_i32_0 = arith.constant 0 : i32
    return %arg1, %c0_i32 : i32, i32
  }
  func.func @transform_4(%arg0: i32, %arg1: i32) -> (i32, i32) {
    %c0_i32 = arith.constant 0 : i32
    %c0_i32_0 = arith.constant 0 : i32
    %c0_i32_1 = arith.constant 0 : i32
    return %c0_i32, %c0_i32_0 : i32, i32
  }
  func.func @transform_5(%arg0: i32, %arg1: i32) -> (i32, i32) {
    %c0_i32 = arith.constant 0 : i32
    %c0_i32_0 = arith.constant 0 : i32
    return %arg0, %c0_i32 : i32, i32
  }
}

</mosaic_0001>

<llo_original>
// kernel: tpu_custom_call.1
$region0: #{tpu_custom_call.1}
  #allocation0 [shape = 'u32[]', space=smem, size = 0x4, offset = 0x4, fixed_abs, tag = 'smem constant byte address 0x4 - core index']
  #allocation1 [shape = 'u32[144,128]{1,0:T(1,128)}', space=vmem, size = 0x12000, scoped, tag = 'internal scratch']
  %s0 = inlined_call_operand.hbm [shape: bf16[16,128], index: 0, kind: input, shape index: {}]
  %s1 = inlined_call_operand.hbm [shape: bf16[128,256], index: 1, kind: input, shape index: {}]
  %s2 = inlined_call_operand.vmem [shape: f32[1,256], index: 2, kind: input, shape index: {}]
  %s3 = inlined_call_operand.hbm [shape: bf16[128,128], index: 3, kind: input, shape index: {}]
  %s4 = inlined_call_operand.vmem [shape: f32[1,128], index: 4, kind: input, shape index: {}]
  %s5 = inlined_call_operand.hbm [shape: f32[16,128], index: 5, kind: output, shape index: {}]
  %s6 = sld [smem:[#allocation0]]
  $region46: #{tpu_custom_call.1} parent=0
    _
  %s8 = ssub.s32 1, %s6
  %s9 = scalar_select 0, %s8, %s6
  $region1: #{tpu_custom_call.1} parent=0
    #allocation2 [shape = 'u8[4096]{0}', space=vmem, size = 0x1000, scoped, tag = 'input window, operand 0, single buffered']
    #allocation3 [shape = 's32[1]{0}', space=sflag, size = 0x4, scoped, tag = 'scoped memory for tpu_custom_call.1']
    #allocation4 [shape = 's32[1]{0}', space=sflag, size = 0x4, scoped, tag = 'scoped memory for tpu_custom_call.1']
    #allocation5 [shape = 'u8[65536]{0}', space=vmem, size = 0x10000, scoped, tag = 'input window, operand 1, single buffered']
    #allocation6 [shape = 's32[1]{0}', space=sflag, size = 0x4, scoped, tag = 'scoped memory for tpu_custom_call.1']
    #allocation7 [shape = 'u8[32768]{0}', space=vmem, size = 0x8000, scoped, tag = 'input window, operand 3, single buffered']
    #allocation8 [shape = 'u8[8192]{0}', space=vmem, size = 0x2000, scoped, tag = 'output window, operand 0, single buffered']
    %10 = vsyncpa [#allocation3], 0
    %11 = vsyncpa [#allocation6], 0
    %12 = vsyncpa [#allocation4], 0
    // Predicated region
    $region2: #{tpu_custom_call.1} parent=1 // pred_check
      _
    $region3: #{tpu_custom_call.1} parent=1 // pred_check_branch
      %14 = sbr.rel (0) target = $region5
    $region4: #{tpu_custom_call.1} parent=1 // pred_region
      %s16 = ssub.s32 128, 128
      %17 = vsyncadd [#allocation3], %s16
      %s18 = sshll.u32 [#allocation2], 4
      %s19 = int_to_ptr.vmem [resolvable:$true] %s18
      %24 = dma.hbm_to_vmem [thread:$0]  %s0, 128, %s19, [#allocation3], 64, 64, 4
    $region5: #{tpu_custom_call.1} parent=1 // pred_fallthru
      _
    // Predicated region
    $region6: #{tpu_custom_call.1} parent=1 // pred_check
      _
    $region7: #{tpu_custom_call.1} parent=1 // pred_check_branch
      %26 = sbr.rel (0) target = $region9
    $region8: #{tpu_custom_call.1} parent=1 // pred_region
      %s28 = ssub.s32 2048, 2048
      %29 = vsyncadd [#allocation6], %s28
      %s30 = sshll.u32 [#allocation5], 4
      %s31 = int_to_ptr.vmem [resolvable:$true] %s30
      %36 = dma.hbm_to_vmem [thread:$0]  %s1, 2048, %s31, [#allocation6], 128, 128, 8
    $region9: #{tpu_custom_call.1} parent=1 // pred_fallthru
      _
    // Predicated region
    $region10: #{tpu_custom_call.1} parent=1 // pred_check
      _
    $region11: #{tpu_custom_call.1} parent=1 // pred_check_branch
      %38 = sbr.rel (0) target = $region13
    $region12: #{tpu_custom_call.1} parent=1 // pred_region
      _
    $region13: #{tpu_custom_call.1} parent=1 // pred_fallthru
      _
    // Predicated region
    $region14: #{tpu_custom_call.1} parent=1 // pred_check
      _
    $region15: #{tpu_custom_call.1} parent=1 // pred_check_branch
      %40 = sbr.rel (0) target = $region17
    $region16: #{tpu_custom_call.1} parent=1 // pred_region
      %s42 = ssub.s32 1024, 1024
      %43 = vsyncadd [#allocation6], %s42
      %s44 = sshll.u32 [#allocation7], 4
      %s45 = int_to_ptr.vmem [resolvable:$true] %s44
      %50 = dma.hbm_to_vmem [thread:$0]  %s3, 1024, %s45, [#allocation6], 64, 64, 4
    $region17: #{tpu_custom_call.1} parent=1 // pred_fallthru
      _
    // Predicated region
    $region18: #{tpu_custom_call.1} parent=1 // pred_check
      _
    $region19: #{tpu_custom_call.1} parent=1 // pred_check_branch
      %52 = sbr.rel (0) target = $region21
    $region20: #{tpu_custom_call.1} parent=1 // pred_region
      _
    $region21: #{tpu_custom_call.1} parent=1 // pred_fallthru
      _
    // Predicated region
    $region22: #{tpu_custom_call.1} parent=1 // pred_check
      _
    $region23: #{tpu_custom_call.1} parent=1 // pred_check_branch
      %54 = sbr.rel (0) target = $region25
    $region24: #{tpu_custom_call.1} parent=1 // pred_region
      %55 = dma.done [#allocation3], 128
    $region25: #{tpu_custom_call.1} parent=1 // pred_fallthru
      _
    // Predicated region
    $region26: #{tpu_custom_call.1} parent=1 // pred_check
      _
    $region27: #{tpu_custom_call.1} parent=1 // pred_check_branch
      %57 = sbr.rel (0) target = $region29
    $region28: #{tpu_custom_call.1} parent=1 // pred_region
      %58 = dma.done [#allocation6], 2048
    $region29: #{tpu_custom_call.1} parent=1 // pred_fallthru
      _
    // Predicated region
    $region30: #{tpu_custom_call.1} parent=1 // pred_check
      _
    $region31: #{tpu_custom_call.1} parent=1 // pred_check_branch
      %60 = sbr.rel (0) target = $region33
    $region32: #{tpu_custom_call.1} parent=1 // pred_region
      %61 = dma.done [#allocation6], 1024
    $region33: #{tpu_custom_call.1} parent=1 // pred_fallthru
      _
    %p63 = scmp.eq.s32.totalorder 0, 0
    // Predicated region
    $region34: #{tpu_custom_call.1} parent=1 // pred_check
      %p64 = pneg %p63
    $region35: #{tpu_custom_call.1} parent=1 // pred_check_branch
      %66 = sbr.rel (%p64) target = $region37
    $region36: #{tpu_custom_call.1} parent=1 // pred_region
      %v67 = vld [vmem:[%s4] sm:$0x1]
      %v69 = vlaneseq
      %v70 = vshrl.u32 %v69, 7
      %v71 = vsub.s32 0, %v70
      %v72 = vrot.slane %v67, %v71
      %74 = vst [vmem:[#allocation8] sm:$0xff] %v72
      %75 = vst [vmem:[#allocation8 + $0x8] sm:$0xff] %v72
    $region37: #{tpu_custom_call.1} parent=1 // pred_fallthru
      _
    %v76 = vld [vmem:[#allocation2] sm:$0xf]
    %v77 = vld [vmem:[#allocation2 + $0x4] sm:$0xf]
    %v78 = vld [vmem:[#allocation5] sm:$0xff]
    %v79 = vld [vmem:[#allocation5 + $0x8] sm:$0xff]
    %v80 = vld [vmem:[#allocation5 + $0x10] sm:$0xff]
    %v81 = vld [vmem:[#allocation5 + $0x18] sm:$0xff]
    %v82 = vld [vmem:[#allocation5 + $0x20] sm:$0xff]
    %v83 = vld [vmem:[#allocation5 + $0x28] sm:$0xff]
    %v84 = vld [vmem:[#allocation5 + $0x30] sm:$0xff]
    %v85 = vld [vmem:[#allocation5 + $0x38] sm:$0xff]
    %v86 = vld [vmem:[#allocation5 + $0x40] sm:$0xff]
    %v87 = vld [vmem:[#allocation5 + $0x48] sm:$0xff]
    %v88 = vld [vmem:[#allocation5 + $0x50] sm:$0xff]
    %v89 = vld [vmem:[#allocation5 + $0x58] sm:$0xff]
    %v90 = vld [vmem:[#allocation5 + $0x60] sm:$0xff]
    %v91 = vld [vmem:[#allocation5 + $0x68] sm:$0xff]
    %v92 = vld [vmem:[#allocation5 + $0x70] sm:$0xff]
    %v93 = vld [vmem:[#allocation5 + $0x78] sm:$0xff]
    %v94 = vld [vmem:[%s2] sm:$0x3]
    %v96 = vlaneseq
    %v97 = vshrl.u32 %v96, 7
    %v98 = vsub.s32 0, %v97
    %v99 = vrot.slane %v94, %v98
    %v100 = vlaneseq
    %v101 = vshrl.u32 %v100, 7
    %v102 = vsub.s32 1, %v101
    %v103 = vrot.slane %v94, %v102
    %v108 = vunpack.c.l.b16 %v76
    %v109 = vunpack.c.l.b16 %v77
    %v110 = vpack.c.b16 %v109, %v108
    %v128 = vunpack.c.l.b16 %v78
    %v129 = vunpack.c.h.b16 %v78
    %v130 = vunpack.c.l.b16 %v79
    %v131 = vunpack.c.h.b16 %v79
    %v132 = vunpack.c.l.b16 %v80
    %v133 = vunpack.c.h.b16 %v80
    %v134 = vunpack.c.l.b16 %v81
    %v135 = vunpack.c.h.b16 %v81
    %v136 = vunpack.c.l.b16 %v82
    %v137 = vunpack.c.h.b16 %v82
    %v138 = vunpack.c.l.b16 %v83
    %v139 = vunpack.c.h.b16 %v83
    %v140 = vunpack.c.l.b16 %v84
    %v141 = vunpack.c.h.b16 %v84
    %v142 = vunpack.c.l.b16 %v85
    %v143 = vunpack.c.h.b16 %v85
    %v144 = vunpack.c.l.b16 %v86
    %v145 = vunpack.c.h.b16 %v86
    %v146 = vunpack.c.l.b16 %v87
    %v147 = vunpack.c.h.b16 %v87
    %v148 = vunpack.c.l.b16 %v88
    %v149 = vunpack.c.h.b16 %v88
    %v150 = vunpack.c.l.b16 %v89
    %v151 = vunpack.c.h.b16 %v89
    %v152 = vunpack.c.l.b16 %v90
    %v153 = vunpack.c.h.b16 %v90
    %v154 = vunpack.c.l.b16 %v91
    %v155 = vunpack.c.h.b16 %v91
    %v156 = vunpack.c.l.b16 %v92
    %v157 = vunpack.c.h.b16 %v92
    %v158 = vunpack.c.l.b16 %v93
    %v159 = vunpack.c.h.b16 %v93
    %v160 = vpack.c.b16 %v130, %v128
    %v161 = vpack.c.b16 %v131, %v129
    %v162 = vpack.c.b16 %v134, %v132
    %v163 = vpack.c.b16 %v135, %v133
    %v164 = vpack.c.b16 %v138, %v136
    %v165 = vpack.c.b16 %v139, %v137
    %v166 = vpack.c.b16 %v142, %v140
    %v167 = vpack.c.b16 %v143, %v141
    %v168 = vpack.c.b16 %v146, %v144
    %v169 = vpack.c.b16 %v147, %v145
    %v170 = vpack.c.b16 %v150, %v148
    %v171 = vpack.c.b16 %v151, %v149
    %v172 = vpack.c.b16 %v154, %v152
    %v173 = vpack.c.b16 %v155, %v153
    %v174 = vpack.c.b16 %v158, %v156
    %v175 = vpack.c.b16 %v159, %v157
    %192 = vmatprep.subr.bf16.mxu0 %v161
    %193 = vmatpush1.bf16.msra.mxu0 %v160
    %194 = vmatprep.subr.bf16.mxu0 %v163
    %195 = vmatpush1.bf16.msra.mxu0 %v162
    %196 = vmatprep.subr.bf16.mxu0 %v165
    %197 = vmatpush1.bf16.msra.mxu0 %v164
    %198 = vmatprep.subr.bf16.mxu0 %v167
    %199 = vmatpush1.bf16.msra.mxu0 %v166
    %200 = vmatprep.subr.bf16.mxu0 %v169
    %201 = vmatpush1.bf16.msra.mxu0 %v168
    %202 = vmatprep.subr.bf16.mxu0 %v171
    %203 = vmatpush1.bf16.msra.mxu0 %v170
    %204 = vmatprep.subr.bf16.mxu0 %v173
    %205 = vmatpush1.bf16.msra.mxu0 %v172
    %206 = vmatprep.subr.bf16.mxu0 %v175
    %207 = vmatpush1.bf16.msra.mxu0 %v174
    %208 = vmatprep.subr.bf16.mxu0 0
    %209 = vmatpush1.bf16.msra.mxu0 0
    %210 = vmatprep.subr.bf16.mxu0 0
    %211 = vmatpush1.bf16.msra.mxu0 0
    %212 = vmatprep.subr.bf16.mxu0 0
    %213 = vmatpush1.bf16.msra.mxu0 0
    %214 = vmatprep.subr.bf16.mxu0 0
    %215 = vmatpush1.bf16.msra.mxu0 0
    %216 = vmatprep.subr.bf16.mxu0 0
    %217 = vmatpush1.bf16.msra.mxu0 0
    %218 = vmatprep.subr.bf16.mxu0 0
    %219 = vmatpush1.bf16.msra.mxu0 0
    %220 = vmatprep.subr.bf16.mxu0 0
    %221 = vmatpush1.bf16.msra.mxu0 0
    %222 = vmatprep.subr.bf16.mxu0 0
    %223 = vmatpush1.bf16.msra.mxu0 0
    %224 = vmatprep.mubr.bf16.mxu0 0
    %225 = vmatmul.mubr.bf16.gmra.mrb[0].mxu0 %v110
    %v226 = vpop.f32.mrb[0].mxu0
    %v227 = vadd.f32 %v99, %v226
    %v228 = vpop.f32.mrb[0].mxu0
    %v229 = vadd.f32 %v103, %v228
    %v230 = vpop.f32.mrb[0].mxu0
    %v231 = vadd.f32 %v99, %v230
    %v232 = vpop.f32.mrb[0].mxu0
    %v233 = vadd.f32 %v103, %v232
    %234 = vdwg.mxu0
    %v235 = vmul.f32 %v229, 0.5
    %v236 = vmul.f32 %v233, 0.5
    %v237 = vmul.f32 %v229, 0.70710677
    %v238 = vmul.f32 %v233, 0.70710677
    %v239 = verf.f32.pop %v237
    %v240 = verf.f32.pop %v238
    %v241 = vadd.f32 %v239, 1.0
    %v242 = vadd.f32 %v240, 1.0
    %v243 = vmul.f32 %v235, %v241
    %v244 = vmul.f32 %v236, %v242
    %v245 = vmul.f32 %v227, %v243
    %v246 = vmul.f32 %v231, %v244
    %v247 = vpack.c.bf16 %v246, %v245
    %v248 = vld [vmem:[#allocation8] sm:$0xff]
    %v249 = vld [vmem:[#allocation8 + $0x8] sm:$0xff]
    %v250 = vld [vmem:[#allocation7] sm:$0xf]
    %v251 = vld [vmem:[#allocation7 + $0x4] sm:$0xf]
    %v252 = vld [vmem:[#allocation7 + $0x8] sm:$0xf]
    %v253 = vld [vmem:[#allocation7 + $0xc] sm:$0xf]
    %v254 = vld [vmem:[#allocation7 + $0x10] sm:$0xf]
    %v255 = vld [vmem:[#allocation7 + $0x14] sm:$0xf]
    %v256 = vld [vmem:[#allocation7 + $0x18] sm:$0xf]
    %v257 = vld [vmem:[#allocation7 + $0x1c] sm:$0xf]
    %v258 = vld [vmem:[#allocation7 + $0x20] sm:$0xf]
    %v259 = vld [vmem:[#allocation7 + $0x24] sm:$0xf]
    %v260 = vld [vmem:[#allocation7 + $0x28] sm:$0xf]
    %v261 = vld [vmem:[#allocation7 + $0x2c] sm:$0xf]
    %v262 = vld [vmem:[#allocation7 + $0x30] sm:$0xf]
    %v263 = vld [vmem:[#allocation7 + $0x34] sm:$0xf]
    %v264 = vld [vmem:[#allocation7 + $0x38] sm:$0xf]
    %v265 = vld [vmem:[#allocation7 + $0x3c] sm:$0xf]
    %v282 = vunpack.c.l.b16 %v250
    %v283 = vunpack.c.l.b16 %v251
    %v284 = vunpack.c.l.b16 %v252
    %v285 = vunpack.c.l.b16 %v253
    %v286 = vunpack.c.l.b16 %v254
    %v287 = vunpack.c.l.b16 %v255
    %v288 = vunpack.c.l.b16 %v256
    %v289 = vunpack.c.l.b16 %v257
    %v290 = vunpack.c.l.b16 %v258
    %v291 = vunpack.c.l.b16 %v259
    %v292 = vunpack.c.l.b16 %v260
    %v293 = vunpack.c.l.b16 %v261
    %v294 = vunpack.c.l.b16 %v262
    %v295 = vunpack.c.l.b16 %v263
    %v296 = vunpack.c.l.b16 %v264
    %v297 = vunpack.c.l.b16 %v265
    %v298 = vpack.c.b16 %v283, %v282
    %v299 = vpack.c.b16 %v285, %v284
    %v300 = vpack.c.b16 %v287, %v286
    %v301 = vpack.c.b16 %v289, %v288
    %v302 = vpack.c.b16 %v291, %v290
    %v303 = vpack.c.b16 %v293, %v292
    %v304 = vpack.c.b16 %v295, %v294
    %v305 = vpack.c.b16 %v297, %v296
    %314 = vmatprep.subr.bf16.mxu0 0
    %315 = vmatpush1.bf16.msra.mxu0 %v298
    %316 = vmatprep.subr.bf16.mxu0 0
    %317 = vmatpush1.bf16.msra.mxu0 %v299
    %318 = vmatprep.subr.bf16.mxu0 0
    %319 = vmatpush1.bf16.msra.mxu0 %v300
    %320 = vmatprep.subr.bf16.mxu0 0
    %321 = vmatpush1.bf16.msra.mxu0 %v301
    %322 = vmatprep.subr.bf16.mxu0 0
    %323 = vmatpush1.bf16.msra.mxu0 %v302
    %324 = vmatprep.subr.bf16.mxu0 0
    %325 = vmatpush1.bf16.msra.mxu0 %v303
    %326 = vmatprep.subr.bf16.mxu0 0
    %327 = vmatpush1.bf16.msra.mxu0 %v304
    %328 = vmatprep.subr.bf16.mxu0 0
    %329 = vmatpush1.bf16.msra.mxu0 %v305
    %330 = vmatprep.subr.bf16.mxu0 0
    %331 = vmatpush1.bf16.msra.mxu0 0
    %332 = vmatprep.subr.bf16.mxu0 0
    %333 = vmatpush1.bf16.msra.mxu0 0
    %334 = vmatprep.subr.bf16.mxu0 0
    %335 = vmatpush1.bf16.msra.mxu0 0
    %336 = vmatprep.subr.bf16.mxu0 0
    %337 = vmatpush1.bf16.msra.mxu0 0
    %338 = vmatprep.subr.bf16.mxu0 0
    %339 = vmatpush1.bf16.msra.mxu0 0
    %340 = vmatprep.subr.bf16.mxu0 0
    %341 = vmatpush1.bf16.msra.mxu0 0
    %342 = vmatprep.subr.bf16.mxu0 0
    %343 = vmatpush1.bf16.msra.mxu0 0
    %344 = vmatprep.subr.bf16.mxu0 0
    %345 = vmatpush1.bf16.msra.mxu0 0
    %346 = vmatprep.mubr.bf16.mxu0 0
    %347 = vmatmul.mubr.bf16.gmra.mrb[0].mxu0 %v247
    %v348 = vpop.f32.mrb[0].mxu0
    %v349 = vadd.f32 0.0, %v348
    %v350 = vpop.f32.mrb[0].mxu0
    %v351 = vpop.f32.mrb[0].mxu0
    %v352 = vadd.f32 0.0, %v351
    %v353 = vpop.f32.mrb[0].mxu0
    %354 = vdwg.mxu0
    %v355 = vadd.f32 %v248, %v349
    %v356 = vadd.f32 %v249, %v352
    %357 = vst [vmem:[#allocation8] sm:$0xff] %v355
    %358 = vst [vmem:[#allocation8 + $0x8] sm:$0xff] %v356
    // Predicated region
    $region38: #{tpu_custom_call.1} parent=1 // pred_check
      _
    $region39: #{tpu_custom_call.1} parent=1 // pred_check_branch
      %360 = sbr.rel (0) target = $region41
    $region40: #{tpu_custom_call.1} parent=1 // pred_region
      %s362 = ssub.s32 256, 256
      %363 = vsyncadd [#allocation4], %s362
      %s364 = sshll.u32 [#allocation8], 4
      %s365 = int_to_ptr.vmem [resolvable:$true] %s364
      %370 = dma.vmem_to_hbm [thread:$0]  %s365, 256, %s5, [#allocation4], 128, 128, 8
    $region41: #{tpu_custom_call.1} parent=1 // pred_fallthru
      _
    // Predicated region
    $region42: #{tpu_custom_call.1} parent=1 // pred_check
      _
    $region43: #{tpu_custom_call.1} parent=1 // pred_check_branch
      %372 = sbr.rel (0) target = $region45
    $region44: #{tpu_custom_call.1} parent=1 // pred_region
      %373 = dma.done [#allocation4], 256
    $region45: #{tpu_custom_call.1} parent=1 // pred_fallthru
      _
    %374 = vsyncpa [#allocation3], 1
    %375 = vsyncpa [#allocation6], 1
    %376 = vsyncpa [#allocation4], 1

</llo_original>
